<compile_context>
chip_gen: v7x
topology: tpu7x:2x2x1
jax: 0.10.0
libtpu: 0.0.40
codegen_flags: <defaults>
</compile_context>

<pallas_src>
import functools

import jax
import jax.numpy as jnp
from jax.experimental import pallas as pl
from jax.experimental.pallas import tpu as pltpu


# ----------------------------------------------------------------------------
# Roll-convention probe (tiny one-off kernel, cached).  Resolves whether
# pltpu.roll matches jnp.roll's shift direction on this backend.
# ----------------------------------------------------------------------------
_ROLL_MATCHES_JNP = None


def _roll_matches_jnp():
    global _ROLL_MATCHES_JNP
    if _ROLL_MATCHES_JNP is None:
        def k(x_ref, o_ref):
            o_ref[...] = pltpu.roll(x_ref[...], 1, axis=1)

        x = jnp.arange(128, dtype=jnp.float32).reshape(1, 128)
        y = pl.pallas_call(
            k, out_shape=jax.ShapeDtypeStruct((1, 128), jnp.float32))(x)
        # jnp.roll convention: out[0] == x[-1] == 127
        _ROLL_MATCHES_JNP = bool(float(y[0, 0]) == 127.0)
    return _ROLL_MATCHES_JNP


# ----------------------------------------------------------------------------
# Generation-aware VMEM budget
# ----------------------------------------------------------------------------
def _vmem_budget_bytes():
    phys = None
    try:
        info = pltpu.get_tpu_info()
        phys = getattr(info, "vmem_capacity_bytes", None)
    except Exception:
        phys = None
    if not phys:
        phys = 64 * 1024 * 1024  # conservative default (v7x per-core VMEM)
    phys = int(phys)
    # Leave headroom for Mosaic internals; target ~3/4 of physical VMEM.
    limit = min(phys * 3 // 4, phys - 8 * 1024 * 1024)
    limit = max(limit, 16 * 1024 * 1024)
    budget = limit // 2           # working-set budget for one grid step
    return limit, budget


def _pick_tile_b(B, Cp, HW, budget_bytes):
    """Pick how many whole images each grid step processes."""
    # ~18 live [Cp, HW] f32 arrays per image (5 double-buffered streams + temps)
    per_image = 18 * Cp * HW * 4
    divisors = sorted((d for d in range(1, B + 1) if B % d == 0), reverse=True)

    def valid(tb):
        if tb * per_image > budget_bytes:
            return False
        # (8,128) rule: lane width must be 128-aligned unless the block spans
        # the whole flattened axis.
        return (tb * HW) % 128 == 0 or tb == B

    # Prefer >= 2 grid steps so a 2-TensorCore chip (v7x) can shard the grid.
    multi = [tb for tb in divisors if valid(tb) and (B // tb) >= 2]
    if multi:
        return multi[0]
    single = [tb for tb in divisors if valid(tb)]
    if single:
        return single[0]
    # TODO(synk): add spatial H-chunk tiling with 1-row halos for large images.
    raise ValueError(
        "Phase Pallas kernel: a single image's working set "
        f"({per_image} bytes) exceeds the VMEM tile budget ({budget_bytes}).")


# ----------------------------------------------------------------------------
# Edge masks (hoisted out of the kernel; resident [8, tile_n] input)
# ----------------------------------------------------------------------------
def _edge_masks(tile_n, H, W):
    col = jnp.arange(tile_n, dtype=jnp.int32)
    w_idx = col % W
    h_idx = (col // W) % H
    rows = []
    for dy in (-1, 0, 1):
        for dx in (-1, 0, 1):
            if dy == 0 and dx == 0:
                continue
            ok = jnp.ones((tile_n,), jnp.bool_)
            if dy == -1:
                ok = jnp.logical_and(ok, h_idx >= 1)
            elif dy == 1:
                ok = jnp.logical_and(ok, h_idx <= H - 2)
            if dx == -1:
                ok = jnp.logical_and(ok, w_idx >= 1)
            elif dx == 1:
                ok = jnp.logical_and(ok, w_idx <= W - 2)
            rows.append(ok.astype(jnp.float32))
    return jnp.stack(rows, axis=0)            # [8, tile_n]


# ----------------------------------------------------------------------------
# Kernel
# ----------------------------------------------------------------------------
def _phase_kernel(H, W, roll_is_jnp,
                  x_ref, deg_ref, xb_ref, mask_ref,
                  wf_ref, bf_ref, ws_ref, wt_ref, wb_ref,
                  v_ref, phi_ref):
    Cp = x_ref.shape[0]
    n = x_ref.shape[-1]

    x = x_ref[...]                              # [Cp, n]
    deg = deg_ref[...]
    masks = mask_ref[...]                       # [8, n]

    def bias(i):
        return wb_ref[i]                        # [Cp, 1] (leading-dim index)

    def dwconv(y, blk):
        """3x3 depthwise conv via lane rotations (XLU) + edge masks + taps."""
        acc = None
        tap = 0
        midx = 0
        for dy in (-1, 0, 1):
            for dx in (-1, 0, 1):
                if dy == 0 and dx == 0:
                    sh = y
                else:
                    s = dy * W + dx
                    amt = ((-s) % n) if roll_is_jnp else (s % n)
                    sh = pltpu.roll(y, amt, axis=1) if amt else y
                    sh = sh * masks[midx:midx + 1, :]
                    midx += 1
                term = wt_ref[blk * 9 + tap] * sh
                acc = term if acc is None else acc + term
                tap += 1
        return acc

    def tail(y, dw_a, bd_a, w2, b2, dw_b, bd_b):
        # dwconv3x3 -> LeakyReLU(0.2) -> conv1x1 -> dwconv3x3
        y = dwconv(y, dw_a) + bias(bd_a)
        y = jnp.maximum(y, 0.2 * y)
        y = jnp.dot(ws_ref[w2], y, preferred_element_type=jnp.float32) + bias(b2)
        y = dwconv(y, dw_b) + bias(bd_b)
        return y

    # Fused Phi/Rho first-layer 1x1 convs: one [2Cp,Cp] matmul on x and one on
    # the degradation map (replaces 4 small matmuls), then split by sublane.
    y12 = (jnp.dot(wf_ref[0], x, preferred_element_type=jnp.float32)
           + jnp.dot(wf_ref[1], deg, preferred_element_type=jnp.float32)
           + bf_ref[...])                       # [2Cp, n]

    phi = tail(y12[:Cp], 0, 0, 0, 1, 1, 2)
    inv_pre = jnp.dot(ws_ref[1], phi, preferred_element_type=jnp.float32) + bias(3)
    inv = tail(inv_pre, 2, 4, 2, 5, 3, 6)
    rho = tail(y12[Cp:], 4, 7, 3, 8, 5, 9)

    v = x - rho * inv * (phi * x - xb_ref[...])
    v_ref[...] = v
    phi_ref[...] = phi


# ----------------------------------------------------------------------------
# Weight packing (all in-kernel weight accesses are leading-dim indices)
# ----------------------------------------------------------------------------
def _pack_weights(weights, C, Cp):
    phi_p, inv_p, rho_p = weights[:8], weights[8:16], weights[16:24]
    pw1, pb1, pdw1, pbd1, pw2, pb2, pdw2, pbd2 = phi_p
    iw1, ib1, idw1, ibd1, iw2, ib2, idw2, ibd2 = inv_p
    rw1, rb1, rdw1, rbd1, rw2, rb2, rdw2, rbd2 = rho_p

    def pad_mat(w):                             # [C, C] -> [Cp, Cp]
        return jnp.pad(w.astype(jnp.float32), ((0, Cp - C), (0, Cp - C)))

    def pad_vec(b):                             # [C] -> [Cp, 1]
        return jnp.pad(b.astype(jnp.float32), (0, Cp - C))[:, None]

    # Fused first-layer weights: Phi rows on top, Rho rows below.
    wf_x = jnp.concatenate([pad_mat(pw1[:, :C]), pad_mat(rw1[:, :C])], axis=0)
    wf_d = jnp.concatenate([pad_mat(pw1[:, C:]), pad_mat(rw1[:, C:])], axis=0)
    wf = jnp.stack([wf_x, wf_d], axis=0)                         # [2, 2Cp, Cp]
    b_first = jnp.concatenate([pad_vec(pb1), pad_vec(rb1)], axis=0)  # [2Cp, 1]

    ws = jnp.stack([pad_mat(pw2), pad_mat(iw1), pad_mat(iw2), pad_mat(rw2)],
                   axis=0)                                       # [4, Cp, Cp]

    def taps(dw):                               # [C,3,3] -> [9, Cp, 1]
        t = dw.reshape(C, 9).astype(jnp.float32).T               # [9, C]
        t = jnp.pad(t, ((0, 0), (0, Cp - C)))
        return t[:, :, None]

    wt = jnp.concatenate([taps(pdw1), taps(pdw2), taps(idw1), taps(idw2),
                          taps(rdw1), taps(rdw2)], axis=0)       # [54, Cp, 1]

    wb = jnp.stack([pad_vec(pbd1), pad_vec(pb2), pad_vec(pbd2),
                    pad_vec(ib1), pad_vec(ibd1), pad_vec(ib2), pad_vec(ibd2),
                    pad_vec(rbd1), pad_vec(rb2), pad_vec(rbd2)],
                   axis=0)                                       # [10, Cp, 1]
    return wf, b_first, ws, wt, wb


# ----------------------------------------------------------------------------
# Wrapper
# ----------------------------------------------------------------------------
@functools.partial(jax.jit, static_argnums=(4,))
def _phase_forward_impl(x, phi_deg, x_bar, weights, roll_is_jnp):
    B, C, H, W = x.shape
    HW = H * W
    Ntot = B * HW
    Cp = max(8, ((C + 7) // 8) * 8)             # pad channels to sublane width

    # [B, C, H, W] -> lane-dense [Cp, B*H*W]
    def to_flat(a):
        a = jnp.transpose(a, (1, 0, 2, 3)).reshape(C, Ntot).astype(jnp.float32)
        return jnp.pad(a, ((0, Cp - C), (0, 0)))

    xf, df, xbf = to_flat(x), to_flat(phi_deg), to_flat(x_bar)
    wf, b_first, ws, wt, wb = _pack_weights(weights, C, Cp)

    vmem_limit, budget = _vmem_budget_bytes()
    tile_b = _pick_tile_b(B, Cp, HW, budget)
    tile_n = tile_b * HW
    grid = (Ntot // tile_n,)

    masks = _edge_masks(tile_n, H, W)           # [8, tile_n] resident input

    data_spec = pl.BlockSpec((Cp, tile_n), lambda i: (0, i))

    def resident(arr):
        if arr.ndim == 2:
            return pl.BlockSpec(arr.shape, lambda i: (0, 0))
        return pl.BlockSpec(arr.shape, lambda i: (0, 0, 0))

    flops = int(Ntot) * (16 * Cp * Cp + 176 * Cp)
    bytes_accessed = (5 * Cp * int(Ntot) * 4
                      + 4 * int(wf.size + b_first.size + ws.size
                                + wt.size + wb.size + masks.size))

    kernel = functools.partial(_phase_kernel, H, W, roll_is_jnp)
    v, phi = pl.pallas_call(
        kernel,
        out_shape=(jax.ShapeDtypeStruct((Cp, Ntot), jnp.float32),
                   jax.ShapeDtypeStruct((Cp, Ntot), jnp.float32)),
        grid_spec=pltpu.PrefetchScalarGridSpec(
            num_scalar_prefetch=0,
            grid=grid,
            in_specs=[data_spec, data_spec, data_spec,
                      resident(masks), resident(wf), resident(b_first),
                      resident(ws), resident(wt), resident(wb)],
            out_specs=[data_spec, data_spec],
        ),
        compiler_params=pltpu.CompilerParams(
            dimension_semantics=("parallel",),
            vmem_limit_bytes=vmem_limit,
        ),
        cost_estimate=pl.CostEstimate(flops=flops, transcendentals=0,
                                      bytes_accessed=bytes_accessed),
    )(xf, df, xbf, masks, wf, b_first, ws, wt, wb)

    def from_flat(a):
        return jnp.transpose(a[:C].reshape(C, B, H, W), (1, 0, 2, 3))

    v = from_flat(v)
    phi = from_flat(phi)
    xk = v  # TODO(synk): apply DAFNet denoiser here once its definition exists.
    return xk, phi


def phase_forward(x, phi_deg, x_bar, weights):
    return _phase_forward_impl(x, phi_deg, x_bar, tuple(weights),
                               _roll_matches_jnp())


# ----------------------------------------------------------------------------
# Deterministic parameter construction (PyTorch-like shapes)
# ----------------------------------------------------------------------------
def _make_branch_params(key, cin, dim):
    ks = jax.random.split(key, 8)
    s = 0.1
    return [
        jax.random.normal(ks[0], (dim, cin), jnp.float32) * s,   # conv1x1 w
        jax.random.normal(ks[1], (dim,), jnp.float32) * s,       # conv1x1 b
        jax.random.normal(ks[2], (dim, 3, 3), jnp.float32) * s,  # dwconv w
        jax.random.normal(ks[3], (dim,), jnp.float32) * s,       # dwconv b
        jax.random.normal(ks[4], (dim, dim), jnp.float32) * s,   # conv1x1 w
        jax.random.normal(ks[5], (dim,), jnp.float32) * s,       # conv1x1 b
        jax.random.normal(ks[6], (dim, 3, 3), jnp.float32) * s,  # dwconv w
        jax.random.normal(ks[7], (dim,), jnp.float32) * s,       # dwconv b
    ]


def make_phase_params(key, dim):
    kphi, kinv, krho = jax.random.split(key, 3)
    return (_make_branch_params(kphi, 2 * dim, dim)
            + _make_branch_params(kinv, dim, dim)
            + _make_branch_params(krho, 2 * dim, dim))


# ----------------------------------------------------------------------------
# Plain-JAX reference (PyTorch conv semantics) for validation
# ----------------------------------------------------------------------------
def _conv1x1_ref(x, w, b):
    c, h, wd = x.shape
    y = jnp.dot(w, x.reshape(c, h * wd),
                precision=jax.lax.Precision.HIGHEST) + b[:, None]
    return y.reshape(w.shape[0], h, wd)


def _shift2d(x, dy, dx):
    c, h, w = x.shape
    if dy == 1:
        x = jnp.concatenate([x[:, 1:, :], jnp.zeros((c, 1, w), x.dtype)], axis=1)
    elif dy == -1:
        x = jnp.concatenate([jnp.zeros((c, 1, w), x.dtype), x[:, :-1, :]], axis=1)
    if dx == 1:
        x = jnp.concatenate([x[:, :, 1:], jnp.zeros((c, h, 1), x.dtype)], axis=2)
    elif dx == -1:
        x = jnp.concatenate([jnp.zeros((c, h, 1), x.dtype), x[:, :, :-1]], axis=2)
    return x


def _dwconv3x3_ref(x, w, b):
    acc = jnp.zeros_like(x)
    for dy in (-1, 0, 1):
        for dx in (-1, 0, 1):
            acc = acc + w[:, dy + 1, dx + 1][:, None, None] * _shift2d(x, dy, dx)
    return acc + b[:, None, None]


def _branch_ref(x, p):
    w1, b1, dw1, bd1, w2, b2, dw2, bd2 = p
    y = _conv1x1_ref(x, w1, b1)
    y = _dwconv3x3_ref(y, dw1, bd1)
    y = jnp.where(y >= 0, y, 0.2 * y)
    y = _conv1x1_ref(y, w2, b2)
    y = _dwconv3x3_ref(y, dw2, bd2)
    return y


def phase_reference(x, deg, xb, weights):
    phi_p, inv_p, rho_p = weights[:8], weights[8:16], weights[16:24]

    def single(xs, ds, xbs):
        xd = jnp.concatenate([xs, ds], axis=0)
        phi = _branch_ref(xd, phi_p)
        inv = _branch_ref(phi, inv_p)
        rho = _branch_ref(xd, rho_p)
        v = xs - rho * inv * (phi * xs - xbs)
        return v, phi

    return jax.vmap(single)(x, deg, xb)


if __name__ == "__main__":
    dim, B, H, W = 4, 2, 16, 16

    key = jax.random.PRNGKey(0)
    kx, kd, kb, kp = jax.random.split(key, 4)
    x = jax.random.normal(kx, (B, dim, H, W), jnp.float32)
    phi_deg = jax.random.normal(kd, (B, dim, H, W), jnp.float32)
    x_bar = jax.random.normal(kb, (B, dim, H, W), jnp.float32)
    weights = make_phase_params(kp, dim)

    xk, phi_new = phase_forward(x, phi_deg, x_bar, weights)
    jax.block_until_ready((xk, phi_new))

    xk_ref, phi_ref = phase_reference(x, phi_deg, x_bar, weights)
    assert jnp.allclose(xk, xk_ref, atol=5e-3, rtol=5e-3), "xk mismatch"
    assert jnp.allclose(phi_new, phi_ref, atol=5e-3, rtol=5e-3), "phi mismatch"

    print("KERNEL_OK")
</pallas_src>

<mosaic_0001>
module attributes {stable_mosaic.version = 11 : i64} {
  func.func @k(%arg0: memref<1x128xf32, #tpu.memory_space<vmem>>, %arg1: memref<1x128xf32, #tpu.memory_space<vmem>>) attributes {dimension_semantics = [], scalar_prefetch = 0 : i64, scratch_operands = 0 : i64, tpu.core_type = #tpu.core_type<tc>} {
    %c0 = arith.constant 0 : index
    %c0_0 = arith.constant 0 : index
    %0 = vector.load %arg0[%c0, %c0_0] : memref<1x128xf32, #tpu.memory_space<vmem>>, vector<1x128xf32>
    %c1_i32 = arith.constant 1 : i32
    %1 = tpu.dynamic_rotate %0 by %c1_i32 dim 1 : vector<1x128xf32>, i32 -> vector<1x128xf32>
    %c0_1 = arith.constant 0 : index
    %c0_2 = arith.constant 0 : index
    %2 = vector.load %arg1[%c0_1, %c0_2] : memref<1x128xf32, #tpu.memory_space<vmem>>, vector<1x128xf32>
    tpu.vector_store %arg1[%c0_1, %c0_2], %1 {strides = array<i32>} : memref<1x128xf32, #tpu.memory_space<vmem>>, vector<1x128xf32>,
    return
  }
}

</mosaic_0001>

<llo_original>
// kernel: tpu_custom_call.1
$region0: #{tpu_custom_call.1}
  #allocation0 [shape = 'u32[]', space=smem, size = 0x4, offset = 0x4, fixed_abs, tag = 'smem constant byte address 0x4 - core index']
  #allocation1 [shape = 'u32[144,128]{1,0:T(1,128)}', space=vmem, size = 0x12000, scoped, tag = 'internal scratch']
  %s0 = inlined_call_operand.hbm [shape: f32[1,128], index: 0, kind: input, shape index: {}]
  %s1 = inlined_call_operand.hbm [shape: f32[1,128], index: 1, kind: output, shape index: {}]
  %s2 = sld [smem:[#allocation0]]
  $region18: #{tpu_custom_call.1} parent=0
    _
  %s4 = ssub.s32 1, %s2
  %s5 = scalar_select 0, %s4, %s2
  $region1: #{tpu_custom_call.1} parent=0
    #allocation2 [shape = 'u8[512]{0}', space=vmem, size = 0x400, scoped, tag = 'input window, operand 0, single buffered']
    #allocation3 [shape = 's32[1]{0}', space=sflag, size = 0x4, scoped, tag = 'scoped memory for tpu_custom_call.1']
    #allocation4 [shape = 's32[1]{0}', space=sflag, size = 0x4, scoped, tag = 'scoped memory for tpu_custom_call.1']
    #allocation5 [shape = 'u8[512]{0}', space=vmem, size = 0x400, scoped, tag = 'output window, operand 0, single buffered']
    %6 = vsyncpa [#allocation3], 0
    %7 = vsyncpa [#allocation4], 0
    // Predicated region
    $region2: #{tpu_custom_call.1} parent=1 // pred_check
      _
    $region3: #{tpu_custom_call.1} parent=1 // pred_check_branch
      %9 = sbr.rel (0) target = $region5
    $region4: #{tpu_custom_call.1} parent=1 // pred_region
      %s11 = ssub.s32 16, 16
      %12 = vsyncadd [#allocation3], %s11
      %s14 = sshll.u32 [#allocation2], 4
      %s15 = int_to_ptr.vmem [resolvable:$true] %s14
      %17 = dma.hbm_to_vmem [thread:$0]  %s0, 16, %s15, [#allocation3]
    $region5: #{tpu_custom_call.1} parent=1 // pred_fallthru
      _
    // Predicated region
    $region6: #{tpu_custom_call.1} parent=1 // pred_check
      _
    $region7: #{tpu_custom_call.1} parent=1 // pred_check_branch
      %19 = sbr.rel (0) target = $region9
    $region8: #{tpu_custom_call.1} parent=1 // pred_region
      %20 = dma.done [#allocation3], 16
    $region9: #{tpu_custom_call.1} parent=1 // pred_fallthru
      _
    %v21 = vld [vmem:[#allocation2] sm:$0x1]
    %22 = vrot.lane.b32.xlu0 %v21, 1
    %v23 = vpop.permute.xlu0 %22
    %24 = vst [vmem:[#allocation5] sm:$0x1] %v23
    // Predicated region
    $region10: #{tpu_custom_call.1} parent=1 // pred_check
      _
    $region11: #{tpu_custom_call.1} parent=1 // pred_check_branch
      %26 = sbr.rel (0) target = $region13
    $region12: #{tpu_custom_call.1} parent=1 // pred_region
      %s28 = ssub.s32 16, 16
      %29 = vsyncadd [#allocation4], %s28
      %s31 = sshll.u32 [#allocation5], 4
      %s32 = int_to_ptr.vmem [resolvable:$true] %s31
      %34 = dma.vmem_to_hbm [thread:$0]  %s32, 16, %s1, [#allocation4]
    $region13: #{tpu_custom_call.1} parent=1 // pred_fallthru
      _
    // Predicated region
    $region14: #{tpu_custom_call.1} parent=1 // pred_check
      _
    $region15: #{tpu_custom_call.1} parent=1 // pred_check_branch
      %36 = sbr.rel (0) target = $region17
    $region16: #{tpu_custom_call.1} parent=1 // pred_region
      %37 = dma.done [#allocation4], 16
    $region17: #{tpu_custom_call.1} parent=1 // pred_fallthru
      _
    %38 = vsyncpa [#allocation3], 1
    %39 = vsyncpa [#allocation4], 1

</llo_original>
